<compile_context>
chip_gen: v7x
topology: tpu7x:2x2x1
jax: 0.10.0
libtpu: 0.0.40
codegen_flags: <defaults>
</compile_context>

<pallas_src>
import jax
import jax.numpy as jnp
import numpy as np
from jax import lax
from jax.experimental import pallas as pl
from jax.experimental.pallas import tpu as pltpu

BN_EPS = 1e-5


def _round_up(x, m):
    return (x + m - 1) // m * m


def _gelu_tanh(x):
    # tanh-form GELU: one EUP tanh + a handful of VALU ops (vs ~20 VALU ops +
    # an exp for the erf polynomial).  Max abs deviation from exact-erf GELU
    # is ~1e-3, well below the bf16-MXU noise floor of this kernel.
    c = 0.7978845608028654  # sqrt(2/pi)
    return 0.5 * x * (1.0 + jnp.tanh(c * (x + 0.044715 * x * x * x)))


def mlp_head_kernel(x_ref, w1_ref, gb_ref, w2_ref, out_ref):
    j = pl.program_id(1)  # hidden (reduction) axis, innermost

    # fc1 tile: (N, dim_p) contracted with (tile_h, dim_p) on its last dim
    # -> (N, tile_h).  bf16 MXU operands, f32 accumulation.
    h = lax.dot_general(x_ref[...], w1_ref[...],
                        dimension_numbers=(((1,), (1,)), ((), ())),
                        preferred_element_type=jnp.float32)

    # BatchNorm1d (training mode): per-feature batch statistics, biased var.
    # The whole (unpadded) batch is resident in every tile -> stats are exact.
    inv_n = 1.0 / h.shape[0]
    mean = jnp.sum(h, axis=0, keepdims=True) * inv_n
    centered = h - mean
    var = jnp.sum(centered * centered, axis=0, keepdims=True) * inv_n
    gb = gb_ref[...]                       # (2, tile_h): [gamma; beta]
    y = centered * lax.rsqrt(var + BN_EPS) * gb[0:1, :] + gb[1:2, :]

    g = _gelu_tanh(y)

    # fc2 partial product: (N, tile_h) x (tile_c, tile_h)^T -> (N, tile_c).
    partial = lax.dot_general(g.astype(jnp.bfloat16), w2_ref[...],
                              dimension_numbers=(((1,), (1,)), ((), ())),
                              preferred_element_type=jnp.float32)

    # First hidden tile writes, later tiles accumulate: saves one zero-fill
    # plus one read-modify-write sweep of the resident accumulator.
    @pl.when(j == 0)
    def _():
        out_ref[...] = partial

    @pl.when(j != 0)
    def _():
        out_ref[...] += partial


def _pad2(a, rows, cols):
    pr, pc = rows - a.shape[0], cols - a.shape[1]
    if pr == 0 and pc == 0:
        return a
    return jnp.pad(a, ((0, pr), (0, pc)))


def _spec(shape, index_map, pipe=None):
    if pipe is None:
        return pl.BlockSpec(shape, index_map)
    return pl.BlockSpec(shape, index_map, pipeline_mode=pipe)


def mlp_head_forward(x, fc1_w, bn_gamma, bn_beta, fc2_w, *, tile_h=None):
    """x: (N, dim); fc1_w: (hidden, dim); fc2_w: (num_classes, hidden)."""
    N, dim = x.shape
    hidden, dim_w = fc1_w.shape
    assert dim_w == dim
    num_classes, hidden_w = fc2_w.shape
    assert hidden_w == hidden

    bf16, f32 = jnp.bfloat16, jnp.float32

    # Lane-dense padded sizes.  v6e/v7x MXUs are 256 wide, so pad/tile the
    # class dim to 256-multiples when it exceeds 128.
    dim_p = _round_up(dim, 128)
    c_p = 128 if num_classes <= 128 else _round_up(num_classes, 256)
    tile_c = c_p if c_p <= 256 else 256
    n_c_tiles = c_p // tile_c

    h_p0 = _round_up(hidden, 128)
    if tile_h is None:
        # Small problem: everything fits comfortably in VMEM -> collapse the
        # hidden axis to a single grid step (per-step overhead ~0.35us).
        small_bytes = (N * dim_p * 2 + h_p0 * dim_p * 2 + c_p * h_p0 * 2
                       + 2 * h_p0 * 4 + 2 * N * c_p * 4)
        if small_bytes <= 24 * 1024 * 1024:
            tile_h = h_p0
        else:
            tile_h = min(512, h_p0)   # 256-multiple: fills the v6e/v7x MXU
    assert tile_h % 128 == 0
    h_p = _round_up(hidden, tile_h)
    n_h_tiles = h_p // tile_h

    # ---- glue (plain JAX): cast to bf16 FIRST, then zero-pad.  Weights stay
    # in their native (out, in) layout (the kernel contracts on the last dim
    # of both operands), so no transpose passes over HBM.  Padding is exactly
    # zero through BN (gamma/beta pad = 0) and GELU, so it never contributes
    # to the fc2 accumulation; padded classes are sliced off at the end.
    x_p = _pad2(x.astype(bf16), N, dim_p)
    w1_p = _pad2(fc1_w.astype(bf16), h_p, dim_p)
    w2_p = _pad2(fc2_w.astype(bf16), c_p, h_p)
    gb_p = _pad2(jnp.stack([bn_gamma.astype(f32), bn_beta.astype(f32)]), 2, h_p)

    # ---- VMEM budget: x is single-buffered (constant index_map); weight
    # tiles get 3-deep buffering when the hidden loop is long enough and it
    # fits.  Limit is clamped to ~80% of the physical VMEM of this chip.
    try:
        phys_vmem = int(pltpu.get_tpu_info().vmem_capacity_bytes)
    except Exception:  # pragma: no cover - conservative fallback (v7x per-TC)
        phys_vmem = 64 * 1024 * 1024
    vmem_cap = (phys_vmem * 4) // 5

    def vmem_need(buf_w):
        return (N * dim_p * 2                     # x (bf16, single buffer)
                + buf_w * tile_h * dim_p * 2      # fc1 weight tiles (bf16)
                + buf_w * tile_c * tile_h * 2     # fc2 weight tiles (bf16)
                + 2 * 2 * tile_h * 4              # gamma/beta tiles (f32)
                + 2 * N * tile_c * 4)             # resident f32 accumulator

    buf_w = 3 if n_h_tiles >= 3 else 2
    if int(1.25 * vmem_need(buf_w)) > vmem_cap:
        buf_w = 2
    vmem_limit = int(min(vmem_cap,
                         max(32 * 1024 * 1024, int(1.25 * vmem_need(buf_w)))))
    # TODO(synk): for very large N the whole-batch-resident x / accumulator no
    # longer fit VMEM; that would need a batch grid axis with two-pass BN.

    w_pipe = pl.Buffered(buf_w) if buf_w != 2 else None

    cost = pl.CostEstimate(
        flops=2 * N * dim_p * h_p * n_c_tiles + 2 * N * h_p * c_p,
        transcendentals=N * h_p * n_c_tiles,
        bytes_accessed=(N * dim_p * 2 + h_p * dim_p * 2 + c_p * h_p * 2
                        + 2 * h_p * 4 + N * c_p * 4),
    )

    out_p = pl.pallas_call(
        mlp_head_kernel,
        out_shape=jax.ShapeDtypeStruct((N, c_p), jnp.float32),
        grid=(n_c_tiles, n_h_tiles),
        in_specs=[
            _spec((N, dim_p), lambda ci, j: (0, 0),
                  pipe=pl.Buffered(1)),                       # x (resident)
            _spec((tile_h, dim_p), lambda ci, j: (j, 0),
                  pipe=w_pipe),                               # fc1 weight tile
            _spec((2, tile_h), lambda ci, j: (0, j)),         # gamma/beta tile
            _spec((tile_c, tile_h), lambda ci, j: (ci, j),
                  pipe=w_pipe),                               # fc2 weight tile
        ],
        out_specs=pl.BlockSpec((N, tile_c), lambda ci, j: (0, ci)),
        compiler_params=pltpu.CompilerParams(
            dimension_semantics=("parallel", "arbitrary"),
            vmem_limit_bytes=vmem_limit),
        cost_estimate=cost,
    )(x_p, w1_p, gb_p, w2_p)

    return out_p[:, :num_classes]


def _reference(x, fc1_w, bn_gamma, bn_beta, fc2_w):
    h = x.astype(jnp.float32) @ fc1_w.astype(jnp.float32).T
    mean = jnp.mean(h, axis=0, keepdims=True)
    var = jnp.mean((h - mean) ** 2, axis=0, keepdims=True)
    y = (h - mean) * jax.lax.rsqrt(var + BN_EPS) * bn_gamma + bn_beta
    g = jax.nn.gelu(y, approximate=False)
    return g @ fc2_w.astype(jnp.float32).T


def _run_case(key, batch, dim, num_classes, mlp_ratio, tile_h=None):
    hidden = min(2048, int(mlp_ratio * dim))
    kx, k1, kg, kb, k2 = jax.random.split(key, 5)
    x = jax.random.normal(kx, (batch, dim), dtype=jnp.float32)
    fc1_w = 0.1 * jax.random.normal(k1, (hidden, dim), dtype=jnp.float32)
    bn_gamma = 1.0 + 0.1 * jax.random.normal(kg, (hidden,), dtype=jnp.float32)
    bn_beta = 0.1 * jax.random.normal(kb, (hidden,), dtype=jnp.float32)
    fc2_w = 0.1 * jax.random.normal(k2, (num_classes, hidden), dtype=jnp.float32)

    out = mlp_head_forward(x, fc1_w, bn_gamma, bn_beta, fc2_w, tile_h=tile_h)
    out = jax.block_until_ready(out)

    ref = _reference(x, fc1_w, bn_gamma, bn_beta, fc2_w)
    # bf16 MXU operands (f32 accumulation) + tanh GELU => relaxed tolerance.
    np.testing.assert_allclose(np.asarray(out), np.asarray(ref),
                               atol=2e-2, rtol=2e-2)


if __name__ == "__main__":
    key = jax.random.PRNGKey(0)
    k0, k1 = jax.random.split(key)
    # MlpHead(dim=64, num_classes=32, mlp_ratio=4) -> hidden=256.
    # Default path: small problem, grid collapses to a single step.
    _run_case(k0, batch=8, dim=64, num_classes=32, mlp_ratio=4)
    # Forced hidden tiling: exercises the accumulate-over-hidden-tiles path.
    _run_case(k0, batch=8, dim=64, num_classes=32, mlp_ratio=4, tile_h=128)
    # Wider head (num_classes=300): exercises the parallel class-tile axis.
    _run_case(k1, batch=8, dim=64, num_classes=300, mlp_ratio=4)
    print("KERNEL_OK")
</pallas_src>

<mosaic_0001>
module attributes {stable_mosaic.version = 11 : i64} {
  func.func @mlp_head_kernel(%arg0: i32, %arg1: i32, %arg2: memref<8x128xbf16, #tpu.memory_space<vmem>>, %arg3: memref<256x128xbf16, #tpu.memory_space<vmem>>, %arg4: memref<2x256xf32, #tpu.memory_space<vmem>>, %arg5: memref<128x256xbf16, #tpu.memory_space<vmem>>, %arg6: memref<8x128xf32, #tpu.memory_space<vmem>>) attributes {dimension_semantics = [#tpu.dimension_semantics<parallel>, #tpu.dimension_semantics<arbitrary>], iteration_bounds = array<i64: 1, 1>, scalar_prefetch = 0 : i64, scratch_operands = 0 : i64, tpu.core_type = #tpu.core_type<tc>, window_params = [{pipeline_mode = #tpu.pipeline_mode<synchronous>, transform_indices = @transform_0, window_bounds = array<i64: 8, 128>}, {transform_indices = @transform_1, window_bounds = array<i64: 256, 128>}, {transform_indices = @transform_2, window_bounds = array<i64: 2, 256>}, {transform_indices = @transform_3, window_bounds = array<i64: 128, 256>}, {transform_indices = @transform_4, window_bounds = array<i64: 8, 128>}]} {
    %c0 = arith.constant 0 : index
    %c0_0 = arith.constant 0 : index
    %0 = vector.load %arg2[%c0, %c0_0] : memref<8x128xbf16, #tpu.memory_space<vmem>>, vector<8x128xbf16>
    %c0_1 = arith.constant 0 : index
    %c0_2 = arith.constant 0 : index
    %1 = vector.load %arg3[%c0_1, %c0_2] : memref<256x128xbf16, #tpu.memory_space<vmem>>, vector<256x128xbf16>
    %cst = arith.constant dense<0.000000e+00> : vector<8x256xf32>
    %2 = tpu.matmul %0, %1, %cst {dimension_numbers = #tpu.dot_dimension_numbers<[1], [1], [0], [0], [0, 0, 1, 0], [], []>} : vector<8x128xbf16>, vector<256x128xbf16>, vector<8x256xf32> -> vector<8x256xf32>
    %cst_3 = arith.constant dense<0.000000e+00> : vector<256xf32>
    %3 = vector.multi_reduction <add>, %2, %cst_3 [0] : vector<8x256xf32> to vector<256xf32>
    %4 = vector.shape_cast %3 : vector<256xf32> to vector<1x256xf32>
    %cst_4 = arith.constant 1.250000e-01 : f32
    %5 = vector.broadcast %cst_4 : f32 to vector<1x256xf32>
    %6 = arith.mulf %4, %5 : vector<1x256xf32>
    %7 = vector.broadcast %6 : vector<1x256xf32> to vector<8x256xf32>
    %8 = arith.subf %2, %7 : vector<8x256xf32>
    %9 = arith.mulf %8, %8 : vector<8x256xf32>
    %cst_5 = arith.constant dense<0.000000e+00> : vector<256xf32>
    %10 = vector.multi_reduction <add>, %9, %cst_5 [0] : vector<8x256xf32> to vector<256xf32>
    %11 = vector.shape_cast %10 : vector<256xf32> to vector<1x256xf32>
    %cst_6 = arith.constant 1.250000e-01 : f32
    %12 = vector.broadcast %cst_6 : f32 to vector<1x256xf32>
    %13 = arith.mulf %11, %12 : vector<1x256xf32>
    %c0_7 = arith.constant 0 : index
    %c0_8 = arith.constant 0 : index
    %14 = vector.load %arg4[%c0_7, %c0_8] : memref<2x256xf32, #tpu.memory_space<vmem>>, vector<2x256xf32>
    %cst_9 = arith.constant 9.99999974E-6 : f32
    %15 = vector.broadcast %cst_9 : f32 to vector<1x256xf32>
    %16 = arith.addf %13, %15 : vector<1x256xf32>
    %17 = math.rsqrt %16 : vector<1x256xf32>
    %18 = vector.broadcast %17 : vector<1x256xf32> to vector<8x256xf32>
    %19 = arith.mulf %8, %18 : vector<8x256xf32>
    %20 = vector.extract_strided_slice %14 {offsets = [0, 0], sizes = [1, 256], strides = [1, 1]} : vector<2x256xf32> to vector<1x256xf32>
    %21 = vector.broadcast %20 : vector<1x256xf32> to vector<8x256xf32>
    %22 = arith.mulf %19, %21 : vector<8x256xf32>
    %23 = vector.extract_strided_slice %14 {offsets = [1, 0], sizes = [1, 256], strides = [1, 1]} : vector<2x256xf32> to vector<1x256xf32>
    %24 = vector.broadcast %23 : vector<1x256xf32> to vector<8x256xf32>
    %25 = arith.addf %22, %24 : vector<8x256xf32>
    %cst_10 = arith.constant 5.000000e-01 : f32
    %26 = vector.broadcast %cst_10 : f32 to vector<8x256xf32>
    %27 = arith.mulf %26, %25 : vector<8x256xf32>
    %cst_11 = arith.constant 4.471500e-02 : f32
    %28 = vector.broadcast %cst_11 : f32 to vector<8x256xf32>
    %29 = arith.mulf %28, %25 : vector<8x256xf32>
    %30 = arith.mulf %29, %25 : vector<8x256xf32>
    %31 = arith.mulf %30, %25 : vector<8x256xf32>
    %32 = arith.addf %25, %31 : vector<8x256xf32>
    %cst_12 = arith.constant 0.797884583 : f32
    %33 = vector.broadcast %cst_12 : f32 to vector<8x256xf32>
    %34 = arith.mulf %33, %32 : vector<8x256xf32>
    %35 = math.tanh %34 : vector<8x256xf32>
    %cst_13 = arith.constant 1.000000e+00 : f32
    %36 = vector.broadcast %cst_13 : f32 to vector<8x256xf32>
    %37 = arith.addf %36, %35 : vector<8x256xf32>
    %38 = arith.mulf %27, %37 : vector<8x256xf32>
    %39 = arith.truncf %38 : vector<8x256xf32> to vector<8x256xbf16>
    %c0_14 = arith.constant 0 : index
    %c0_15 = arith.constant 0 : index
    %40 = vector.load %arg5[%c0_14, %c0_15] : memref<128x256xbf16, #tpu.memory_space<vmem>>, vector<128x256xbf16>
    %cst_16 = arith.constant dense<0.000000e+00> : vector<8x128xf32>
    %41 = tpu.matmul %39, %40, %cst_16 {dimension_numbers = #tpu.dot_dimension_numbers<[1], [1], [0], [0], [0, 0, 1, 0], [], []>} : vector<8x256xbf16>, vector<128x256xbf16>, vector<8x128xf32> -> vector<8x128xf32>
    %c0_i32 = arith.constant 0 : i32
    %42 = arith.cmpi eq, %arg1, %c0_i32 : i32
    %43 = arith.extui %42 : i1 to i32
    %c0_i32_17 = arith.constant 0 : i32
    %44 = arith.cmpi ne, %43, %c0_i32_17 : i32
    scf.if %44 {
      %c0_20 = arith.constant 0 : index
      %c0_21 = arith.constant 0 : index
      %48 = vector.load %arg6[%c0_20, %c0_21] : memref<8x128xf32, #tpu.memory_space<vmem>>, vector<8x128xf32>
      tpu.vector_store %arg6[%c0_20, %c0_21], %41 {strides = array<i32>} : memref<8x128xf32, #tpu.memory_space<vmem>>, vector<8x128xf32>,
    } else {
    }
    %c0_i32_18 = arith.constant 0 : i32
    %45 = arith.cmpi ne, %arg1, %c0_i32_18 : i32
    %46 = arith.extui %45 : i1 to i32
    %c0_i32_19 = arith.constant 0 : i32
    %47 = arith.cmpi ne, %46, %c0_i32_19 : i32
    scf.if %47 {
      %c0_20 = arith.constant 0 : index
      %c0_21 = arith.constant 0 : index
      %48 = vector.load %arg6[%c0_20, %c0_21] : memref<8x128xf32, #tpu.memory_space<vmem>>, vector<8x128xf32>
      %49 = arith.addf %48, %41 : vector<8x128xf32>
      %c0_22 = arith.constant 0 : index
      %c0_23 = arith.constant 0 : index
      %50 = vector.load %arg6[%c0_22, %c0_23] : memref<8x128xf32, #tpu.memory_space<vmem>>, vector<8x128xf32>
      tpu.vector_store %arg6[%c0_22, %c0_23], %49 {strides = array<i32>} : memref<8x128xf32, #tpu.memory_space<vmem>>, vector<8x128xf32>,
    } else {
    }
    return
  }
  func.func @transform_0(%arg0: i32, %arg1: i32) -> (i32, i32) {
    %c0_i32 = arith.constant 0 : i32
    %c0_i32_0 = arith.constant 0 : i32
    %c0_i32_1 = arith.constant 0 : i32
    return %c0_i32, %c0_i32_0 : i32, i32
  }
  func.func @transform_1(%arg0: i32, %arg1: i32) -> (i32, i32) {
    %c0_i32 = arith.constant 0 : i32
    %c0_i32_0 = arith.constant 0 : i32
    return %arg1, %c0_i32 : i32, i32
  }
  func.func @transform_2(%arg0: i32, %arg1: i32) -> (i32, i32) {
    %c0_i32 = arith.constant 0 : i32
    %c0_i32_0 = arith.constant 0 : i32
    return %c0_i32, %arg1 : i32, i32
  }
  func.func @transform_3(%arg0: i32, %arg1: i32) -> (i32, i32) {
    %c0_i32 = arith.constant 0 : i32
    return %arg0, %arg1 : i32, i32
  }
  func.func @transform_4(%arg0: i32, %arg1: i32) -> (i32, i32) {
    %c0_i32 = arith.constant 0 : i32
    %c0_i32_0 = arith.constant 0 : i32
    return %c0_i32, %arg0 : i32, i32
  }
}

</mosaic_0001>

<llo_original>
// kernel: tpu_custom_call.1
$region0: #{tpu_custom_call.1}
  #allocation0 [shape = 'u32[]', space=smem, size = 0x4, offset = 0x4, fixed_abs, tag = 'smem constant byte address 0x4 - core index']
  #allocation1 [shape = 'u32[144,128]{1,0:T(1,128)}', space=vmem, size = 0x12000, scoped, tag = 'internal scratch']
  %s0 = inlined_call_operand.hbm [shape: bf16[8,128], index: 0, kind: input, shape index: {}]
  %s1 = inlined_call_operand.hbm [shape: bf16[256,128], index: 1, kind: input, shape index: {}]
  %s2 = inlined_call_operand.vmem [shape: f32[2,256], index: 2, kind: input, shape index: {}]
  %s3 = inlined_call_operand.hbm [shape: bf16[128,256], index: 3, kind: input, shape index: {}]
  %s4 = inlined_call_operand.hbm [shape: f32[8,128], index: 4, kind: output, shape index: {}]
  %s5 = sld [smem:[#allocation0]]
  $region46: #{tpu_custom_call.1} parent=0
    _
  %s7 = ssub.s32 1, %s5
  %s8 = scalar_select 0, %s7, %s5
  $region1: #{tpu_custom_call.1} parent=0
    #allocation2 [shape = 'u8[2048]{0}', space=vmem, size = 0x800, scoped, tag = 'input window, operand 0, single buffered']
    #allocation3 [shape = 's32[1]{0}', space=sflag, size = 0x4, scoped, tag = 'scoped memory for tpu_custom_call.1']
    #allocation4 [shape = 's32[1]{0}', space=sflag, size = 0x4, scoped, tag = 'scoped memory for tpu_custom_call.1']
    #allocation5 [shape = 'u8[65536]{0}', space=vmem, size = 0x10000, scoped, tag = 'input window, operand 1, single buffered']
    #allocation6 [shape = 's32[1]{0}', space=sflag, size = 0x4, scoped, tag = 'scoped memory for tpu_custom_call.1']
    #allocation7 [shape = 'u8[65536]{0}', space=vmem, size = 0x10000, scoped, tag = 'input window, operand 3, single buffered']
    #allocation8 [shape = 'u8[4096]{0}', space=vmem, size = 0x1000, scoped, tag = 'output window, operand 0, single buffered']
    %9 = vsyncpa [#allocation3], 0
    %10 = vsyncpa [#allocation6], 0
    %11 = vsyncpa [#allocation4], 0
    // Predicated region
    $region2: #{tpu_custom_call.1} parent=1 // pred_check
      _
    $region3: #{tpu_custom_call.1} parent=1 // pred_check_branch
      %13 = sbr.rel (0) target = $region5
    $region4: #{tpu_custom_call.1} parent=1 // pred_region
      %s15 = ssub.s32 64, 64
      %16 = vsyncadd [#allocation3], %s15
      %s18 = sshll.u32 [#allocation2], 4
      %s19 = int_to_ptr.vmem [resolvable:$true] %s18
      %21 = dma.hbm_to_vmem [thread:$0]  %s0, 64, %s19, [#allocation3]
    $region5: #{tpu_custom_call.1} parent=1 // pred_fallthru
      _
    // Predicated region
    $region6: #{tpu_custom_call.1} parent=1 // pred_check
      _
    $region7: #{tpu_custom_call.1} parent=1 // pred_check_branch
      %23 = sbr.rel (0) target = $region9
    $region8: #{tpu_custom_call.1} parent=1 // pred_region
      %s25 = ssub.s32 2048, 2048
      %26 = vsyncadd [#allocation6], %s25
      %s27 = sshll.u32 [#allocation5], 4
      %s28 = int_to_ptr.vmem [resolvable:$true] %s27
      %33 = dma.hbm_to_vmem [thread:$0]  %s1, 2048, %s28, [#allocation6], 64, 64, 4
    $region9: #{tpu_custom_call.1} parent=1 // pred_fallthru
      _
    // Predicated region
    $region10: #{tpu_custom_call.1} parent=1 // pred_check
      _
    $region11: #{tpu_custom_call.1} parent=1 // pred_check_branch
      %35 = sbr.rel (0) target = $region13
    $region12: #{tpu_custom_call.1} parent=1 // pred_region
      _
    $region13: #{tpu_custom_call.1} parent=1 // pred_fallthru
      _
    // Predicated region
    $region14: #{tpu_custom_call.1} parent=1 // pred_check
      _
    $region15: #{tpu_custom_call.1} parent=1 // pred_check_branch
      %37 = sbr.rel (0) target = $region17
    $region16: #{tpu_custom_call.1} parent=1 // pred_region
      %s39 = ssub.s32 2048, 2048
      %40 = vsyncadd [#allocation6], %s39
      %s41 = sshll.u32 [#allocation7], 4
      %s42 = int_to_ptr.vmem [resolvable:$true] %s41
      %47 = dma.hbm_to_vmem [thread:$0]  %s3, 2048, %s42, [#allocation6], 128, 128, 8
    $region17: #{tpu_custom_call.1} parent=1 // pred_fallthru
      _
    // Predicated region
    $region18: #{tpu_custom_call.1} parent=1 // pred_check
      _
    $region19: #{tpu_custom_call.1} parent=1 // pred_check_branch
      %49 = sbr.rel (0) target = $region21
    $region20: #{tpu_custom_call.1} parent=1 // pred_region
      %50 = dma.done [#allocation3], 64
    $region21: #{tpu_custom_call.1} parent=1 // pred_fallthru
      _
    // Predicated region
    $region22: #{tpu_custom_call.1} parent=1 // pred_check
      _
    $region23: #{tpu_custom_call.1} parent=1 // pred_check_branch
      %52 = sbr.rel (0) target = $region25
    $region24: #{tpu_custom_call.1} parent=1 // pred_region
      %53 = dma.done [#allocation6], 2048
    $region25: #{tpu_custom_call.1} parent=1 // pred_fallthru
      _
    // Predicated region
    $region26: #{tpu_custom_call.1} parent=1 // pred_check
      _
    $region27: #{tpu_custom_call.1} parent=1 // pred_check_branch
      %55 = sbr.rel (0) target = $region29
    $region28: #{tpu_custom_call.1} parent=1 // pred_region
      %56 = dma.done [#allocation6], 2048
    $region29: #{tpu_custom_call.1} parent=1 // pred_fallthru
      _
    %v58 = vld [vmem:[#allocation2] sm:$0xf]
    %v59 = vld [vmem:[#allocation5] sm:$0xf]
    %v60 = vld [vmem:[#allocation5 + $0x4] sm:$0xf]
    %v61 = vld [vmem:[#allocation5 + $0x8] sm:$0xf]
    %v62 = vld [vmem:[#allocation5 + $0xc] sm:$0xf]
    %v63 = vld [vmem:[#allocation5 + $0x10] sm:$0xf]
    %v64 = vld [vmem:[#allocation5 + $0x14] sm:$0xf]
    %v65 = vld [vmem:[#allocation5 + $0x18] sm:$0xf]
    %v66 = vld [vmem:[#allocation5 + $0x1c] sm:$0xf]
    %v67 = vld [vmem:[#allocation5 + $0x20] sm:$0xf]
    %v68 = vld [vmem:[#allocation5 + $0x24] sm:$0xf]
    %v69 = vld [vmem:[#allocation5 + $0x28] sm:$0xf]
    %v70 = vld [vmem:[#allocation5 + $0x2c] sm:$0xf]
    %v71 = vld [vmem:[#allocation5 + $0x30] sm:$0xf]
    %v72 = vld [vmem:[#allocation5 + $0x34] sm:$0xf]
    %v73 = vld [vmem:[#allocation5 + $0x38] sm:$0xf]
    %v74 = vld [vmem:[#allocation5 + $0x3c] sm:$0xf]
    %v75 = vld [vmem:[#allocation5 + $0x40] sm:$0xf]
    %v76 = vld [vmem:[#allocation5 + $0x44] sm:$0xf]
    %v77 = vld [vmem:[#allocation5 + $0x48] sm:$0xf]
    %v78 = vld [vmem:[#allocation5 + $0x4c] sm:$0xf]
    %v79 = vld [vmem:[#allocation5 + $0x50] sm:$0xf]
    %v80 = vld [vmem:[#allocation5 + $0x54] sm:$0xf]
    %v81 = vld [vmem:[#allocation5 + $0x58] sm:$0xf]
    %v82 = vld [vmem:[#allocation5 + $0x5c] sm:$0xf]
    %v83 = vld [vmem:[#allocation5 + $0x60] sm:$0xf]
    %v84 = vld [vmem:[#allocation5 + $0x64] sm:$0xf]
    %v85 = vld [vmem:[#allocation5 + $0x68] sm:$0xf]
    %v86 = vld [vmem:[#allocation5 + $0x6c] sm:$0xf]
    %v87 = vld [vmem:[#allocation5 + $0x70] sm:$0xf]
    %v88 = vld [vmem:[#allocation5 + $0x74] sm:$0xf]
    %v89 = vld [vmem:[#allocation5 + $0x78] sm:$0xf]
    %v90 = vld [vmem:[#allocation5 + $0x7c] sm:$0xf]
    %v123 = vunpack.c.l.b16 %v59
    %v124 = vunpack.c.l.b16 %v60
    %v125 = vunpack.c.l.b16 %v61
    %v126 = vunpack.c.l.b16 %v62
    %v127 = vunpack.c.l.b16 %v63
    %v128 = vunpack.c.l.b16 %v64
    %v129 = vunpack.c.l.b16 %v65
    %v130 = vunpack.c.l.b16 %v66
    %v131 = vunpack.c.l.b16 %v67
    %v132 = vunpack.c.l.b16 %v68
    %v133 = vunpack.c.l.b16 %v69
    %v134 = vunpack.c.l.b16 %v70
    %v135 = vunpack.c.l.b16 %v71
    %v136 = vunpack.c.l.b16 %v72
    %v137 = vunpack.c.l.b16 %v73
    %v138 = vunpack.c.l.b16 %v74
    %v139 = vunpack.c.l.b16 %v75
    %v140 = vunpack.c.l.b16 %v76
    %v141 = vunpack.c.l.b16 %v77
    %v142 = vunpack.c.l.b16 %v78
    %v143 = vunpack.c.l.b16 %v79
    %v144 = vunpack.c.l.b16 %v80
    %v145 = vunpack.c.l.b16 %v81
    %v146 = vunpack.c.l.b16 %v82
    %v147 = vunpack.c.l.b16 %v83
    %v148 = vunpack.c.l.b16 %v84
    %v149 = vunpack.c.l.b16 %v85
    %v150 = vunpack.c.l.b16 %v86
    %v151 = vunpack.c.l.b16 %v87
    %v152 = vunpack.c.l.b16 %v88
    %v153 = vunpack.c.l.b16 %v89
    %v154 = vunpack.c.l.b16 %v90
    %v155 = vpack.c.b16 %v124, %v123
    %v156 = vpack.c.b16 %v126, %v125
    %v157 = vpack.c.b16 %v128, %v127
    %v158 = vpack.c.b16 %v130, %v129
    %v159 = vpack.c.b16 %v132, %v131
    %v160 = vpack.c.b16 %v134, %v133
    %v161 = vpack.c.b16 %v136, %v135
    %v162 = vpack.c.b16 %v138, %v137
    %v163 = vpack.c.b16 %v140, %v139
    %v164 = vpack.c.b16 %v142, %v141
    %v165 = vpack.c.b16 %v144, %v143
    %v166 = vpack.c.b16 %v146, %v145
    %v167 = vpack.c.b16 %v148, %v147
    %v168 = vpack.c.b16 %v150, %v149
    %v169 = vpack.c.b16 %v152, %v151
    %v170 = vpack.c.b16 %v154, %v153
    %187 = vmatprep.subr.bf16.mxu0 0
    %188 = vmatpush1.bf16.xpose.msra.mxu0 %v155
    %189 = vmatprep.subr.bf16.mxu0 0
    %190 = vmatpush1.bf16.xpose.msra.mxu0 %v156
    %191 = vmatprep.subr.bf16.mxu0 0
    %192 = vmatpush1.bf16.xpose.msra.mxu0 %v157
    %193 = vmatprep.subr.bf16.mxu0 0
    %194 = vmatpush1.bf16.xpose.msra.mxu0 %v158
    %195 = vmatprep.subr.bf16.mxu0 0
    %196 = vmatpush1.bf16.xpose.msra.mxu0 %v159
    %197 = vmatprep.subr.bf16.mxu0 0
    %198 = vmatpush1.bf16.xpose.msra.mxu0 %v160
    %199 = vmatprep.subr.bf16.mxu0 0
    %200 = vmatpush1.bf16.xpose.msra.mxu0 %v161
    %201 = vmatprep.subr.bf16.mxu0 0
    %202 = vmatpush1.bf16.xpose.msra.mxu0 %v162
    %203 = vmatprep.subr.bf16.mxu0 0
    %204 = vmatpush1.bf16.xpose.msra.mxu0 %v163
    %205 = vmatprep.subr.bf16.mxu0 0
    %206 = vmatpush1.bf16.xpose.msra.mxu0 %v164
    %207 = vmatprep.subr.bf16.mxu0 0
    %208 = vmatpush1.bf16.xpose.msra.mxu0 %v165
    %209 = vmatprep.subr.bf16.mxu0 0
    %210 = vmatpush1.bf16.xpose.msra.mxu0 %v166
    %211 = vmatprep.subr.bf16.mxu0 0
    %212 = vmatpush1.bf16.xpose.msra.mxu0 %v167
    %213 = vmatprep.subr.bf16.mxu0 0
    %214 = vmatpush1.bf16.xpose.msra.mxu0 %v168
    %215 = vmatprep.subr.bf16.mxu0 0
    %216 = vmatpush1.bf16.xpose.msra.mxu0 %v169
    %217 = vmatprep.subr.bf16.mxu0 0
    %218 = vmatpush1.bf16.xpose.msra.mxu0 %v170
    %219 = vmatprep.mubr.bf16.mxu0 0
    %220 = vmatmul.mubr.bf16.gmra.mrb[0].mxu0 %v58
    %v221 = vpop.f32.mrb[0].mxu0
    %v222 = vadd.f32 0.0, %v221
    %v223 = vpop.f32.mrb[0].mxu0
    %v224 = vadd.f32 0.0, %v223
    %v225 = vpop.f32.mrb[0].mxu0
    %v226 = vpop.f32.mrb[0].mxu0
    %227 = vdwg.mxu0
    %v228 = vrot.slane %v222, 4
    %v229 = vadd.f32 %v222, %v228
    %v230 = vrot.slane %v229, 2
    %v231 = vadd.f32 %v229, %v230
    %v232 = vrot.slane %v231, 1
    %v233 = vadd.f32 %v231, %v232
    %v234 = vrot.slane %v224, 4
    %v235 = vadd.f32 %v224, %v234
    %v236 = vrot.slane %v235, 2
    %v237 = vadd.f32 %v235, %v236
    %v238 = vrot.slane %v237, 1
    %v239 = vadd.f32 %v237, %v238
    %v240 = vmul.f32 %v233, 0.125
    %v241 = vmul.f32 %v239, 0.125
    %v242 = vsub.f32 %v222, %v240
    %v243 = vsub.f32 %v224, %v241
    %v244 = vmul.f32 %v242, %v242
    %v245 = vmul.f32 %v243, %v243
    %v246 = vrot.slane %v244, 4
    %v247 = vadd.f32 %v244, %v246
    %v248 = vrot.slane %v247, 2
    %v249 = vadd.f32 %v247, %v248
    %v250 = vrot.slane %v249, 1
    %v251 = vadd.f32 %v249, %v250
    %v252 = vrot.slane %v245, 4
    %v253 = vadd.f32 %v245, %v252
    %v254 = vrot.slane %v253, 2
    %v255 = vadd.f32 %v253, %v254
    %v256 = vrot.slane %v255, 1
    %v257 = vadd.f32 %v255, %v256
    %v258 = vmul.f32 %v251, 0.125
    %v259 = vmul.f32 %v257, 0.125
    %v260 = vld [vmem:[%s2] sm:$0xf]
    %v261 = vadd.f32 %v258, 1e-05
    %v262 = vadd.f32 %v259, 1e-05
    %v263 = vrsqrt.pop %v261
    %v264 = vrsqrt.pop %v262
    %v265 = vmul.f32 %v242, %v263
    %v266 = vmul.f32 %v243, %v264
    %v268 = vlaneseq
    %v269 = vshrl.u32 %v268, 7
    %v270 = vsub.s32 0, %v269
    %v271 = vrot.slane %v260, %v270
    %v272 = vlaneseq
    %v273 = vshrl.u32 %v272, 7
    %v274 = vsub.s32 2, %v273
    %v275 = vrot.slane %v260, %v274
    %v278 = vlaneseq
    %v279 = vshrl.u32 %v278, 7
    %v280 = vsub.s32 0, %v279
    %v281 = vrot.slane %v271, %v280
    %v282 = vlaneseq
    %v283 = vshrl.u32 %v282, 7
    %v284 = vsub.s32 0, %v283
    %v285 = vrot.slane %v275, %v284
    %v286 = vmul.f32 %v265, %v281
    %v287 = vmul.f32 %v266, %v285
    %v288 = vlaneseq
    %v289 = vshrl.u32 %v288, 7
    %v290 = vsub.s32 1, %v289
    %v291 = vrot.slane %v260, %v290
    %v292 = vlaneseq
    %v293 = vshrl.u32 %v292, 7
    %v294 = vsub.s32 3, %v293
    %v295 = vrot.slane %v260, %v294
    %v298 = vlaneseq
    %v299 = vshrl.u32 %v298, 7
    %v300 = vsub.s32 1, %v299
    %v301 = vrot.slane %v291, %v300
    %v302 = vlaneseq
    %v303 = vshrl.u32 %v302, 7
    %v304 = vsub.s32 1, %v303
    %v305 = vrot.slane %v295, %v304
    %v306 = vadd.f32 %v286, %v301
    %v307 = vadd.f32 %v287, %v305
    %v308 = vmul.f32 %v306, 0.5
    %v309 = vmul.f32 %v307, 0.5
    %v310 = vmul.f32 %v306, 0.044715
    %v311 = vmul.f32 %v307, 0.044715
    %v312 = vmul.f32 %v310, %v306
    %v313 = vmul.f32 %v311, %v307
    %v314 = vmul.f32 %v312, %v306
    %v315 = vmul.f32 %v313, %v307
    %v316 = vadd.f32 %v306, %v314
    %v317 = vadd.f32 %v307, %v315
    %v318 = vmul.f32 %v316, 0.7978846
    %v319 = vmul.f32 %v317, 0.7978846
    %v320 = vtanh.pop %v318
    %v321 = vtanh.pop %v319
    %v322 = vadd.f32 %v320, 1.0
    %v323 = vadd.f32 %v321, 1.0
    %v324 = vmul.f32 %v308, %v322
    %v325 = vmul.f32 %v309, %v323
    %v326 = vpack.c.bf16 %v324, %v324
    %v327 = vpack.c.bf16 %v325, %v325
    %v328 = vld [vmem:[#allocation7] sm:$0xff]
    %v329 = vld [vmem:[#allocation7 + $0x8] sm:$0xff]
    %v330 = vld [vmem:[#allocation7 + $0x10] sm:$0xff]
    %v331 = vld [vmem:[#allocation7 + $0x18] sm:$0xff]
    %v332 = vld [vmem:[#allocation7 + $0x20] sm:$0xff]
    %v333 = vld [vmem:[#allocation7 + $0x28] sm:$0xff]
    %v334 = vld [vmem:[#allocation7 + $0x30] sm:$0xff]
    %v335 = vld [vmem:[#allocation7 + $0x38] sm:$0xff]
    %v336 = vld [vmem:[#allocation7 + $0x40] sm:$0xff]
    %v337 = vld [vmem:[#allocation7 + $0x48] sm:$0xff]
    %v338 = vld [vmem:[#allocation7 + $0x50] sm:$0xff]
    %v339 = vld [vmem:[#allocation7 + $0x58] sm:$0xff]
    %v340 = vld [vmem:[#allocation7 + $0x60] sm:$0xff]
    %v341 = vld [vmem:[#allocation7 + $0x68] sm:$0xff]
    %v342 = vld [vmem:[#allocation7 + $0x70] sm:$0xff]
    %v343 = vld [vmem:[#allocation7 + $0x78] sm:$0xff]
    %v360 = vunpack.c.l.b16 %v328
    %v361 = vunpack.c.h.b16 %v328
    %v362 = vunpack.c.l.b16 %v329
    %v363 = vunpack.c.h.b16 %v329
    %v364 = vunpack.c.l.b16 %v330
    %v365 = vunpack.c.h.b16 %v330
    %v366 = vunpack.c.l.b16 %v331
    %v367 = vunpack.c.h.b16 %v331
    %v368 = vunpack.c.l.b16 %v332
    %v369 = vunpack.c.h.b16 %v332
    %v370 = vunpack.c.l.b16 %v333
    %v371 = vunpack.c.h.b16 %v333
    %v372 = vunpack.c.l.b16 %v334
    %v373 = vunpack.c.h.b16 %v334
    %v374 = vunpack.c.l.b16 %v335
    %v375 = vunpack.c.h.b16 %v335
    %v376 = vunpack.c.l.b16 %v336
    %v377 = vunpack.c.h.b16 %v336
    %v378 = vunpack.c.l.b16 %v337
    %v379 = vunpack.c.h.b16 %v337
    %v380 = vunpack.c.l.b16 %v338
    %v381 = vunpack.c.h.b16 %v338
    %v382 = vunpack.c.l.b16 %v339
    %v383 = vunpack.c.h.b16 %v339
    %v384 = vunpack.c.l.b16 %v340
    %v385 = vunpack.c.h.b16 %v340
    %v386 = vunpack.c.l.b16 %v341
    %v387 = vunpack.c.h.b16 %v341
    %v388 = vunpack.c.l.b16 %v342
    %v389 = vunpack.c.h.b16 %v342
    %v390 = vunpack.c.l.b16 %v343
    %v391 = vunpack.c.h.b16 %v343
    %v392 = vpack.c.b16 %v362, %v360
    %v393 = vpack.c.b16 %v363, %v361
    %v394 = vpack.c.b16 %v366, %v364
    %v395 = vpack.c.b16 %v367, %v365
    %v396 = vpack.c.b16 %v370, %v368
    %v397 = vpack.c.b16 %v371, %v369
    %v398 = vpack.c.b16 %v374, %v372
    %v399 = vpack.c.b16 %v375, %v373
    %v400 = vpack.c.b16 %v378, %v376
    %v401 = vpack.c.b16 %v379, %v377
    %v402 = vpack.c.b16 %v382, %v380
    %v403 = vpack.c.b16 %v383, %v381
    %v404 = vpack.c.b16 %v386, %v384
    %v405 = vpack.c.b16 %v387, %v385
    %v406 = vpack.c.b16 %v390, %v388
    %v407 = vpack.c.b16 %v391, %v389
    %424 = vmatprep.subr.bf16.mxu0 %v393
    %425 = vmatpush1.bf16.xpose.msra.mxu0 %v392
    %426 = vmatprep.subr.bf16.mxu0 %v395
    %427 = vmatpush1.bf16.xpose.msra.mxu0 %v394
    %428 = vmatprep.subr.bf16.mxu0 %v397
    %429 = vmatpush1.bf16.xpose.msra.mxu0 %v396
    %430 = vmatprep.subr.bf16.mxu0 %v399
    %431 = vmatpush1.bf16.xpose.msra.mxu0 %v398
    %432 = vmatprep.subr.bf16.mxu0 %v401
    %433 = vmatpush1.bf16.xpose.msra.mxu0 %v400
    %434 = vmatprep.subr.bf16.mxu0 %v403
    %435 = vmatpush1.bf16.xpose.msra.mxu0 %v402
    %436 = vmatprep.subr.bf16.mxu0 %v405
    %437 = vmatpush1.bf16.xpose.msra.mxu0 %v404
    %438 = vmatprep.subr.bf16.mxu0 %v407
    %439 = vmatpush1.bf16.xpose.msra.mxu0 %v406
    %440 = vmatprep.subr.bf16.mxu0 0
    %441 = vmatpush1.bf16.xpose.msra.mxu0 0
    %442 = vmatprep.subr.bf16.mxu0 0
    %443 = vmatpush1.bf16.xpose.msra.mxu0 0
    %444 = vmatprep.subr.bf16.mxu0 0
    %445 = vmatpush1.bf16.xpose.msra.mxu0 0
    %446 = vmatprep.subr.bf16.mxu0 0
    %447 = vmatpush1.bf16.xpose.msra.mxu0 0
    %448 = vmatprep.subr.bf16.mxu0 0
    %449 = vmatpush1.bf16.xpose.msra.mxu0 0
    %450 = vmatprep.subr.bf16.mxu0 0
    %451 = vmatpush1.bf16.xpose.msra.mxu0 0
    %452 = vmatprep.subr.bf16.mxu0 0
    %453 = vmatpush1.bf16.xpose.msra.mxu0 0
    %454 = vmatprep.subr.bf16.mxu0 0
    %455 = vmatpush1.bf16.xpose.msra.mxu0 0
    %456 = vmatprep.mubr.bf16.mxu0 %v327
    %457 = vmatmul.mubr.bf16.gmra.mrb[0].mxu0 %v326
    %v458 = vpop.f32.mrb[0].mxu0
    %v459 = vadd.f32 0.0, %v458
    %v460 = vpop.f32.mrb[0].mxu0
    %v461 = vpop.f32.mrb[0].mxu0
    %v462 = vpop.f32.mrb[0].mxu0
    %463 = vdwg.mxu0
    %p464 = scmp.eq.s32.totalorder 0, 0
    // Predicated region
    $region30: #{tpu_custom_call.1} parent=1 // pred_check
      %p465 = pneg %p464
    $region31: #{tpu_custom_call.1} parent=1 // pred_check_branch
      %467 = sbr.rel (%p465) target = $region33
    $region32: #{tpu_custom_call.1} parent=1 // pred_region
      %468 = vst [vmem:[#allocation8] sm:$0xff] %v459
    $region33: #{tpu_custom_call.1} parent=1 // pred_fallthru
      _
    %p469 = scmp.ne.s32.totalorder 0, 0
    // Predicated region
    $region34: #{tpu_custom_call.1} parent=1 // pred_check
      %p470 = pneg %p469
    $region35: #{tpu_custom_call.1} parent=1 // pred_check_branch
      %472 = sbr.rel (%p470) target = $region37
    $region36: #{tpu_custom_call.1} parent=1 // pred_region
      %v473 = vld [vmem:[#allocation8] sm:$0xff]
      %v474 = vadd.f32 %v473, %v459
      %475 = vst [vmem:[#allocation8] sm:$0xff] %v474
    $region37: #{tpu_custom_call.1} parent=1 // pred_fallthru
      _
    // Predicated region
    $region38: #{tpu_custom_call.1} parent=1 // pred_check
      _
    $region39: #{tpu_custom_call.1} parent=1 // pred_check_branch
      %477 = sbr.rel (0) target = $region41
    $region40: #{tpu_custom_call.1} parent=1 // pred_region
      %s479 = ssub.s32 128, 128
      %480 = vsyncadd [#allocation4], %s479
      %s482 = sshll.u32 [#allocation8], 4
      %s483 = int_to_ptr.vmem [resolvable:$true] %s482
      %485 = dma.vmem_to_hbm [thread:$0]  %s483, 128, %s4, [#allocation4]
    $region41: #{tpu_custom_call.1} parent=1 // pred_fallthru
      _
    // Predicated region
    $region42: #{tpu_custom_call.1} parent=1 // pred_check
      _
    $region43: #{tpu_custom_call.1} parent=1 // pred_check_branch
      %487 = sbr.rel (0) target = $region45
    $region44: #{tpu_custom_call.1} parent=1 // pred_region
      %488 = dma.done [#allocation4], 128
    $region45: #{tpu_custom_call.1} parent=1 // pred_fallthru
      _
    %489 = vsyncpa [#allocation3], 1
    %490 = vsyncpa [#allocation6], 1
    %491 = vsyncpa [#allocation4], 1

</llo_original>
